<compile_context>
chip_gen: v5e
topology: v5e:2x2
jax: 0.10.0
libtpu: 0.0.40
codegen_flags: <defaults>
</compile_context>

<pallas_src>
import jax
import jax.numpy as jnp
from jax import lax
from jax.experimental import pallas as pl
from jax.experimental.pallas import tpu as pltpu

LN_EPS = 1e-5
LANE = 128


def _round_up(x, m):
    return ((x + m - 1) // m) * m


def _pick_batch_tile(B, H, C_pad, vmem_budget_bytes=8 << 20):
    # Per-row f32 VMEM cost: x tile (up to 3 in-flight buffers) + out tile
    # (double-buffered) + ~2 LayerNorm-sized temporaries.  Budget is kept well
    # under every generation's default scoped VMEM limit (16 MiB on v5e).
    per_row_bytes = (3 * H + 2 * C_pad + 2 * H) * 4
    tb = vmem_budget_bytes // per_row_bytes
    tb = max(8, min(1024, tb))
    tb = (tb // 8) * 8                      # sublane multiple
    return min(tb, _round_up(B, 8))         # never bigger than the batch


def _classifier_kernel(x_ref, gamma_ref, beta_ref, w_ref, b_ref, o_ref):
    # x_ref: (TB, H) CLS rows for this batch tile.
    x = x_ref[...].astype(jnp.float32)

    # ---- LayerNorm over hidden dim (biased variance, like torch) ----------
    # Single-pass variance (E[x^2] - mean^2): avoids materializing a (TB, H)
    # centered temporary; clamp guards tiny negative values from cancellation.
    mean = jnp.mean(x, axis=-1, keepdims=True)                       # (TB, 1)
    var = jnp.maximum(
        jnp.mean(x * x, axis=-1, keepdims=True) - mean * mean, 0.0)  # (TB, 1)
    inv = lax.rsqrt(var + LN_EPS)
    xn = (x - mean) * inv * gamma_ref[...] + beta_ref[...]           # (TB, H)

    # ---- Linear: xn @ W (W pre-transposed + lane-padded to (H, C_pad)) ----
    logits = jnp.dot(xn, w_ref[...].astype(jnp.float32),
                     preferred_element_type=jnp.float32)
    o_ref[...] = (logits + b_ref[...]).astype(o_ref.dtype)


def prepare_classifier_params(gamma, beta, weight, bias):
    """One-time parameter prep (hoisted out of the per-call hot path).

    gamma/beta: (H,) LayerNorm affine; weight: (C, H) torch layout; bias: (C,).
    Returns (gamma2, beta2, w_t, bias_p) with the weight transposed and the
    class dim zero-padded to a lane-dense 128 multiple.
    """
    C, H = weight.shape
    C_pad = _round_up(max(C, 1), LANE)
    w_t = jnp.zeros((H, C_pad), jnp.float32).at[:, :C].set(
        weight.T.astype(jnp.float32))
    bias_p = jnp.zeros((1, C_pad), jnp.float32).at[:, :C].set(
        bias.reshape(1, C).astype(jnp.float32))
    gamma2 = gamma.reshape(1, H).astype(jnp.float32)
    beta2 = beta.reshape(1, H).astype(jnp.float32)
    return gamma2, beta2, w_t, bias_p


def transtab_linear_classifier_forward(x, gamma2, beta2, w_t, bias_p):
    """x: (B, S, H); remaining args from prepare_classifier_params.

    Returns (B, C_pad) float32 logits (lane-padded; caller slices [:, :C]).
    """
    B, S, H = x.shape
    C_pad = w_t.shape[1]

    TB = _pick_batch_tile(B, H, C_pad)
    grid = (pl.cdiv(B, TB),)

    if H % LANE == 0:
        # Free reshape of a contiguous array; the (TB, H) block reads only the
        # first H lanes of each (S*H)-wide batch row == the CLS token row,
        # directly from HBM (no wrapper slice, no intermediate).
        x_in = x.reshape(B, S * H)
        x_block = (TB, H)
        x_index_map = lambda i: (i, 0)
    else:
        # Fallback: 3-D spec pinned to seq position 0, seq dim squeezed out.
        x_in = x
        x_block = (TB, None, H)
        x_index_map = lambda i: (i, 0, 0)

    x_spec_kwargs = {}
    if grid[0] > 2:
        # Strided CLS-row gather (H*4 bytes per row, stride S*H*4) has lower
        # effective DMA bandwidth than contiguous tiles; one extra in-flight
        # buffer hides the latency at the cost of a single TB*H tile of VMEM.
        x_spec_kwargs["pipeline_mode"] = pl.Buffered(3)
    x_spec = pl.BlockSpec(x_block, x_index_map, **x_spec_kwargs)

    out = pl.pallas_call(
        _classifier_kernel,
        out_shape=jax.ShapeDtypeStruct((B, C_pad), jnp.float32),
        grid=grid,
        in_specs=[
            x_spec,                                        # CLS rows, pipelined
            pl.BlockSpec((1, H), lambda i: (0, 0)),        # gamma, resident
            pl.BlockSpec((1, H), lambda i: (0, 0)),        # beta, resident
            pl.BlockSpec((H, C_pad), lambda i: (0, 0)),    # W^T, resident
            pl.BlockSpec((1, C_pad), lambda i: (0, 0)),    # bias, resident
        ],
        out_specs=pl.BlockSpec((TB, C_pad), lambda i: (i, 0)),
        compiler_params=pltpu.CompilerParams(
            dimension_semantics=("parallel",)),            # megacore on v7x
    )(x_in, gamma2, beta2, w_t, bias_p)
    return out


def transtab_linear_classifier(x, gamma, beta, weight, bias):
    """Convenience wrapper: torch-layout params in, (B, C) logits out.

    For repeated calls, hoist prepare_classifier_params out and call
    transtab_linear_classifier_forward directly (or let jit constant-fold it).
    """
    C = weight.shape[0]
    params = prepare_classifier_params(gamma, beta, weight, bias)
    out = transtab_linear_classifier_forward(x, *params)
    # Consumers wanting torch-style (B, C); this extra slice pass is accepted
    # per review (do NOT shrink the store itself below 128 lanes).
    return out[:, :C]


def _reference(x, gamma, beta, weight, bias):
    xc = x[:, 0, :].astype(jnp.float32)
    mean = jnp.mean(xc, axis=-1, keepdims=True)
    var = jnp.mean((xc - mean) ** 2, axis=-1, keepdims=True)
    xn = (xc - mean) / jnp.sqrt(var + LN_EPS)
    xn = xn * gamma + beta
    return xn @ weight.T + bias


if __name__ == "__main__":
    # Small shapes consistent with the module: batch=8, seq=8, hidden=128,
    # num_class=3 (> 2, so fc output dim = 3).
    B, S, H = 8, 8, 128
    num_class = 3
    C = num_class if num_class > 2 else 1

    key = jax.random.PRNGKey(0)
    kx, kw, kb = jax.random.split(key, 3)

    x = jax.random.normal(kx, (B, S, H), dtype=jnp.float32)

    # Deterministic synthetic parameters (shapes from __init__):
    #   nn.Linear(hidden_dim, C): weight (C, H), bias (C,)
    #   nn.LayerNorm(hidden_dim): gamma ones, beta zeros
    bound = 1.0 / (H ** 0.5)
    weight = jax.random.uniform(kw, (C, H), minval=-bound, maxval=bound,
                                dtype=jnp.float32)
    bias = jax.random.uniform(kb, (C,), minval=-bound, maxval=bound,
                              dtype=jnp.float32)
    gamma = jnp.ones((H,), dtype=jnp.float32)
    beta = jnp.zeros((H,), dtype=jnp.float32)

    out = transtab_linear_classifier(x, gamma, beta, weight, bias)
    out = jax.block_until_ready(out)

    ref = _reference(x, gamma, beta, weight, bias)
    assert out.shape == (B, C)
    assert jnp.allclose(out, ref, atol=1e-4, rtol=1e-4), "mismatch vs reference"

    print("KERNEL_OK")
</pallas_src>

<mosaic_0001>
module attributes {stable_mosaic.version = 11 : i64} {
  func.func @_classifier_kernel(%arg0: i32, %arg1: memref<8x128xf32, #tpu.memory_space<vmem>>, %arg2: memref<1x128xf32, #tpu.memory_space<vmem>>, %arg3: memref<1x128xf32, #tpu.memory_space<vmem>>, %arg4: memref<128x128xf32, #tpu.memory_space<vmem>>, %arg5: memref<1x128xf32, #tpu.memory_space<vmem>>, %arg6: memref<8x128xf32, #tpu.memory_space<vmem>>) attributes {dimension_semantics = [#tpu.dimension_semantics<parallel>], iteration_bounds = array<i64: 1>, scalar_prefetch = 0 : i64, scratch_operands = 0 : i64, tpu.core_type = #tpu.core_type<tc>, window_params = [{transform_indices = @transform_0, window_bounds = array<i64: 8, 128>}, {pipeline_mode = #tpu.pipeline_mode<synchronous>, transform_indices = @transform_1, window_bounds = array<i64: 1, 128>}, {pipeline_mode = #tpu.pipeline_mode<synchronous>, transform_indices = @transform_2, window_bounds = array<i64: 1, 128>}, {pipeline_mode = #tpu.pipeline_mode<synchronous>, transform_indices = @transform_3, window_bounds = array<i64: 128, 128>}, {pipeline_mode = #tpu.pipeline_mode<synchronous>, transform_indices = @transform_4, window_bounds = array<i64: 1, 128>}, {transform_indices = @transform_5, window_bounds = array<i64: 8, 128>}]} {
    %c0 = arith.constant 0 : index
    %c0_0 = arith.constant 0 : index
    %0 = vector.load %arg1[%c0, %c0_0] : memref<8x128xf32, #tpu.memory_space<vmem>>, vector<8x128xf32>
    %cst = arith.constant dense<0.000000e+00> : vector<8xf32>
    %1 = vector.multi_reduction <add>, %0, %cst [1] : vector<8x128xf32> to vector<8xf32>
    %2 = vector.shape_cast %1 : vector<8xf32> to vector<8x1xf32>
    %cst_1 = arith.constant 1.280000e+02 : f32
    %3 = vector.broadcast %cst_1 : f32 to vector<8x1xf32>
    %4 = arith.divf %2, %3 : vector<8x1xf32>
    %5 = arith.mulf %0, %0 : vector<8x128xf32>
    %cst_2 = arith.constant dense<0.000000e+00> : vector<8xf32>
    %6 = vector.multi_reduction <add>, %5, %cst_2 [1] : vector<8x128xf32> to vector<8xf32>
    %7 = vector.shape_cast %6 : vector<8xf32> to vector<8x1xf32>
    %cst_3 = arith.constant 1.280000e+02 : f32
    %8 = vector.broadcast %cst_3 : f32 to vector<8x1xf32>
    %9 = arith.divf %7, %8 : vector<8x1xf32>
    %10 = arith.mulf %4, %4 : vector<8x1xf32>
    %11 = arith.subf %9, %10 : vector<8x1xf32>
    %cst_4 = arith.constant 0.000000e+00 : f32
    %12 = vector.broadcast %cst_4 : f32 to vector<8x1xf32>
    %13 = arith.maximumf %11, %12 : vector<8x1xf32>
    %cst_5 = arith.constant 9.99999974E-6 : f32
    %14 = vector.broadcast %cst_5 : f32 to vector<8x1xf32>
    %15 = arith.addf %13, %14 : vector<8x1xf32>
    %16 = math.rsqrt %15 : vector<8x1xf32>
    %17 = vector.broadcast %4 : vector<8x1xf32> to vector<8x128xf32>
    %18 = arith.subf %0, %17 : vector<8x128xf32>
    %19 = vector.broadcast %16 : vector<8x1xf32> to vector<8x128xf32>
    %20 = arith.mulf %18, %19 : vector<8x128xf32>
    %c0_6 = arith.constant 0 : index
    %c0_7 = arith.constant 0 : index
    %21 = vector.load %arg2[%c0_6, %c0_7] : memref<1x128xf32, #tpu.memory_space<vmem>>, vector<1x128xf32>
    %22 = vector.broadcast %21 : vector<1x128xf32> to vector<8x128xf32>
    %23 = arith.mulf %20, %22 : vector<8x128xf32>
    %c0_8 = arith.constant 0 : index
    %c0_9 = arith.constant 0 : index
    %24 = vector.load %arg3[%c0_8, %c0_9] : memref<1x128xf32, #tpu.memory_space<vmem>>, vector<1x128xf32>
    %25 = vector.broadcast %24 : vector<1x128xf32> to vector<8x128xf32>
    %26 = arith.addf %23, %25 : vector<8x128xf32>
    %c0_10 = arith.constant 0 : index
    %c0_11 = arith.constant 0 : index
    %27 = vector.load %arg4[%c0_10, %c0_11] : memref<128x128xf32, #tpu.memory_space<vmem>>, vector<128x128xf32>
    %cst_12 = arith.constant dense<0.000000e+00> : vector<8x128xf32>
    %28 = tpu.matmul %26, %27, %cst_12 {dimension_numbers = #tpu.dot_dimension_numbers<[1], [0], [0], [1], [0, 0, 1, 1], [], []>} : vector<8x128xf32>, vector<128x128xf32>, vector<8x128xf32> -> vector<8x128xf32>
    %c0_13 = arith.constant 0 : index
    %c0_14 = arith.constant 0 : index
    %29 = vector.load %arg5[%c0_13, %c0_14] : memref<1x128xf32, #tpu.memory_space<vmem>>, vector<1x128xf32>
    %30 = vector.broadcast %29 : vector<1x128xf32> to vector<8x128xf32>
    %31 = arith.addf %28, %30 : vector<8x128xf32>
    %c0_15 = arith.constant 0 : index
    %c0_16 = arith.constant 0 : index
    %32 = vector.load %arg6[%c0_15, %c0_16] : memref<8x128xf32, #tpu.memory_space<vmem>>, vector<8x128xf32>
    tpu.vector_store %arg6[%c0_15, %c0_16], %31 {strides = array<i32>} : memref<8x128xf32, #tpu.memory_space<vmem>>, vector<8x128xf32>,
    return
  }
  func.func @transform_0(%arg0: i32) -> (i32, i32) {
    %c0_i32 = arith.constant 0 : i32
    %c0_i32_0 = arith.constant 0 : i32
    return %arg0, %c0_i32 : i32, i32
  }
  func.func @transform_1(%arg0: i32) -> (i32, i32) {
    %c0_i32 = arith.constant 0 : i32
    %c0_i32_0 = arith.constant 0 : i32
    %c0_i32_1 = arith.constant 0 : i32
    return %c0_i32, %c0_i32_0 : i32, i32
  }
  func.func @transform_2(%arg0: i32) -> (i32, i32) {
    %c0_i32 = arith.constant 0 : i32
    %c0_i32_0 = arith.constant 0 : i32
    %c0_i32_1 = arith.constant 0 : i32
    return %c0_i32, %c0_i32_0 : i32, i32
  }
  func.func @transform_3(%arg0: i32) -> (i32, i32) {
    %c0_i32 = arith.constant 0 : i32
    %c0_i32_0 = arith.constant 0 : i32
    %c0_i32_1 = arith.constant 0 : i32
    return %c0_i32, %c0_i32_0 : i32, i32
  }
  func.func @transform_4(%arg0: i32) -> (i32, i32) {
    %c0_i32 = arith.constant 0 : i32
    %c0_i32_0 = arith.constant 0 : i32
    %c0_i32_1 = arith.constant 0 : i32
    return %c0_i32, %c0_i32_0 : i32, i32
  }
  func.func @transform_5(%arg0: i32) -> (i32, i32) {
    %c0_i32 = arith.constant 0 : i32
    %c0_i32_0 = arith.constant 0 : i32
    return %arg0, %c0_i32 : i32, i32
  }
}

</mosaic_0001>

<llo_original>
// kernel: tpu_custom_call.1
$region0: #{tpu_custom_call.1}
  #allocation0 [shape = 'u32[]', space=smem, size = 0x4, offset = 0x4, fixed_abs, tag = 'smem constant byte address 0x4 - core index']
  #allocation1 [shape = 'u32[72,128]{1,0:T(1,128)}', space=vmem, size = 0x9000, scoped, tag = 'internal scratch']
  %s0 = inlined_call_operand.hbm [shape: f32[8,1024], index: 0, kind: input, shape index: {}]
  %s1 = inlined_call_operand.hbm [shape: f32[1,128], index: 1, kind: input, shape index: {}]
  %s2 = inlined_call_operand.vmem [shape: f32[1,128], index: 2, kind: input, shape index: {}]
  %s3 = inlined_call_operand.hbm [shape: f32[128,128], index: 3, kind: input, shape index: {}]
  %s4 = inlined_call_operand.vmem [shape: f32[1,128], index: 4, kind: input, shape index: {}]
  %s5 = inlined_call_operand.hbm [shape: f32[8,128], index: 5, kind: output, shape index: {}]
  %s6 = sld [smem:[#allocation0]]
  $region42: #{tpu_custom_call.1} parent=0
    _
  %s8 = ssub.s32 1, %s6
  %s9 = scalar_select 0, %s8, %s6
  $region1: #{tpu_custom_call.1} parent=0
    #allocation2 [shape = 'u8[4096]{0}', space=vmem, size = 0x1000, scoped, tag = 'input window, operand 0, single buffered']
    #allocation3 [shape = 's32[1]{0}', space=sflag, size = 0x4, scoped, tag = 'scoped memory for tpu_custom_call.1']
    #allocation4 [shape = 's32[1]{0}', space=sflag, size = 0x4, scoped, tag = 'scoped memory for tpu_custom_call.1']
    #allocation5 [shape = 'u8[512]{0}', space=vmem, size = 0x400, scoped, tag = 'input window, operand 1, single buffered']
    #allocation6 [shape = 's32[1]{0}', space=sflag, size = 0x4, scoped, tag = 'scoped memory for tpu_custom_call.1']
    #allocation7 [shape = 'u8[65536]{0}', space=vmem, size = 0x10000, scoped, tag = 'input window, operand 3, single buffered']
    #allocation8 [shape = 'u8[4096]{0}', space=vmem, size = 0x1000, scoped, tag = 'output window, operand 0, single buffered']
    %10 = vsyncpa [#allocation3], 0
    %11 = vsyncpa [#allocation6], 0
    %12 = vsyncpa [#allocation4], 0
    // Predicated region
    $region2: #{tpu_custom_call.1} parent=1 // pred_check
      _
    $region3: #{tpu_custom_call.1} parent=1 // pred_check_branch
      %14 = sbr.rel (0) target = $region5
    $region4: #{tpu_custom_call.1} parent=1 // pred_region
      %16 = vsyncadd [#allocation3], 0
      %s18 = sshll.u32 %s0, 4
      %s19 = int_to_ptr.hbm [resolvable:$true] %s18
      %s20 = sshll.u32 [#allocation2], 4
      %s21 = int_to_ptr.vmem [resolvable:$true] %s20
      %23 = dma.hbm_to_vmem [thread:$0]  %s19, 128, %s21, [#allocation3]
    $region5: #{tpu_custom_call.1} parent=1 // pred_fallthru
      _
    // Predicated region
    $region6: #{tpu_custom_call.1} parent=1 // pred_check
      _
    $region7: #{tpu_custom_call.1} parent=1 // pred_check_branch
      %25 = sbr.rel (0) target = $region9
    $region8: #{tpu_custom_call.1} parent=1 // pred_region
      %27 = vsyncadd [#allocation6], 0
      %s29 = sshll.u32 %s1, 4
      %s30 = int_to_ptr.hbm [resolvable:$true] %s29
      %s31 = sshll.u32 [#allocation5], 4
      %s32 = int_to_ptr.vmem [resolvable:$true] %s31
      %34 = dma.hbm_to_vmem [thread:$0]  %s30, 16, %s32, [#allocation6]
    $region9: #{tpu_custom_call.1} parent=1 // pred_fallthru
      _
    // Predicated region
    $region10: #{tpu_custom_call.1} parent=1 // pred_check
      _
    $region11: #{tpu_custom_call.1} parent=1 // pred_check_branch
      %36 = sbr.rel (0) target = $region13
    $region12: #{tpu_custom_call.1} parent=1 // pred_region
      _
    $region13: #{tpu_custom_call.1} parent=1 // pred_fallthru
      _
    // Predicated region
    $region14: #{tpu_custom_call.1} parent=1 // pred_check
      _
    $region15: #{tpu_custom_call.1} parent=1 // pred_check_branch
      %38 = sbr.rel (0) target = $region17
    $region16: #{tpu_custom_call.1} parent=1 // pred_region
      %40 = vsyncadd [#allocation6], 0
      %s41 = sshll.u32 %s3, 4
      %s42 = int_to_ptr.hbm [resolvable:$true] %s41
      %s43 = sshll.u32 [#allocation7], 4
      %s44 = int_to_ptr.vmem [resolvable:$true] %s43
      %49 = dma.hbm_to_vmem [thread:$0]  %s42, 2048, %s44, [#allocation6], 128, 128, 8
    $region17: #{tpu_custom_call.1} parent=1 // pred_fallthru
      _
    // Predicated region
    $region18: #{tpu_custom_call.1} parent=1 // pred_check
      _
    $region19: #{tpu_custom_call.1} parent=1 // pred_check_branch
      %51 = sbr.rel (0) target = $region21
    $region20: #{tpu_custom_call.1} parent=1 // pred_region
      _
    $region21: #{tpu_custom_call.1} parent=1 // pred_fallthru
      _
    // Predicated region
    $region22: #{tpu_custom_call.1} parent=1 // pred_check
      _
    $region23: #{tpu_custom_call.1} parent=1 // pred_check_branch
      %53 = sbr.rel (0) target = $region25
    $region24: #{tpu_custom_call.1} parent=1 // pred_region
      %55 = dma.done [#allocation3], 128
    $region25: #{tpu_custom_call.1} parent=1 // pred_fallthru
      _
    // Predicated region
    $region26: #{tpu_custom_call.1} parent=1 // pred_check
      _
    $region27: #{tpu_custom_call.1} parent=1 // pred_check_branch
      %57 = sbr.rel (0) target = $region29
    $region28: #{tpu_custom_call.1} parent=1 // pred_region
      %59 = dma.done [#allocation6], 16
    $region29: #{tpu_custom_call.1} parent=1 // pred_fallthru
      _
    // Predicated region
    $region30: #{tpu_custom_call.1} parent=1 // pred_check
      _
    $region31: #{tpu_custom_call.1} parent=1 // pred_check_branch
      %61 = sbr.rel (0) target = $region33
    $region32: #{tpu_custom_call.1} parent=1 // pred_region
      %63 = dma.done [#allocation6], 2048
    $region33: #{tpu_custom_call.1} parent=1 // pred_fallthru
      _
    %v64 = vld [vmem:[#allocation2] sm:$0xff]
    %65 = vadd.xlane.f32.xlu0 %v64
    %v66 = vpop.xlane.xlu0 %65
    %v67 = vrcp.pop 128.0
    %v68 = vmul.f32 128.0, %v67
    %v69 = vsub.f32 1.0, %v68
    %v70 = vmul.f32 %v67, %v69
    %v71 = vadd.f32 %v67, %v70
    %vm72 = vweird.f32 %v67
    %v73 = vsel %vm72, %v67, %v71
    %v74 = vmul.f32 %v66, %v73
    %v75 = vmul.f32 %v64, %v64
    %76 = vadd.xlane.f32.xlu0 %v75
    %v77 = vpop.xlane.xlu0 %76
    %v78 = vmul.f32 %v77, %v73
    %v79 = vmul.f32 %v74, %v74
    %v80 = vsub.f32 %v78, %v79
    %v81 = vmax.f32 %v80, 0.0
    %v82 = vadd.f32 %v81, 1e-05
    %v83 = vrsqrt.pop %v82
    %v84 = vmul.f32 %v83, %v82
    %v85 = vmul.f32 %v84, %v83
    %v86 = vmul.f32 0.5, %v85
    %v87 = vsub.f32 1.5, %v86
    %v88 = vmul.f32 %v83, %v87
    %vm89 = vweird.f32 %v82
    %vm90 = vweird.f32 %v83
    %vm91 = vmor %vm89, %vm90
    %v92 = vsel %vm91, %v83, %v88
    %v93 = vsub.f32 %v64, %v74
    %v94 = vmul.f32 %v93, %v92
    %v95 = vld [vmem:[#allocation5] sm:$0x1]
    %v97 = vperm.slane %v95, 0
    %v99 = vmul.f32 %v94, %v97
    %v100 = vld [vmem:[%s2] sm:$0x1]
    %v102 = vperm.slane %v100, 0
    %v104 = vadd.f32 %v99, %v102
    %v105 = vld [vmem:[#allocation7] sm:$0xff]
    %v106 = vld [vmem:[#allocation7 + $0x8] sm:$0xff]
    %v107 = vld [vmem:[#allocation7 + $0x10] sm:$0xff]
    %v108 = vld [vmem:[#allocation7 + $0x18] sm:$0xff]
    %v109 = vld [vmem:[#allocation7 + $0x20] sm:$0xff]
    %v110 = vld [vmem:[#allocation7 + $0x28] sm:$0xff]
    %v111 = vld [vmem:[#allocation7 + $0x30] sm:$0xff]
    %v112 = vld [vmem:[#allocation7 + $0x38] sm:$0xff]
    %v113 = vld [vmem:[#allocation7 + $0x40] sm:$0xff]
    %v114 = vld [vmem:[#allocation7 + $0x48] sm:$0xff]
    %v115 = vld [vmem:[#allocation7 + $0x50] sm:$0xff]
    %v116 = vld [vmem:[#allocation7 + $0x58] sm:$0xff]
    %v117 = vld [vmem:[#allocation7 + $0x60] sm:$0xff]
    %v118 = vld [vmem:[#allocation7 + $0x68] sm:$0xff]
    %v119 = vld [vmem:[#allocation7 + $0x70] sm:$0xff]
    %v120 = vld [vmem:[#allocation7 + $0x78] sm:$0xff]
    %v121 = vld [vmem:[%s4] sm:$0x1]
    %v123 = vperm.slane %v121, 0
    %125 = vmatpush.msra.mxu0 %v120
    %126 = vmatpush.msra.mxu0 %v119
    %127 = vmatpush.msra.mxu0 %v118
    %128 = vmatpush.msra.mxu0 %v117
    %129 = vmatpush.msra.mxu0 %v116
    %130 = vmatpush.msra.mxu0 %v115
    %131 = vmatpush.msra.mxu0 %v114
    %132 = vmatpush.msra.mxu0 %v113
    %133 = vmatpush.msra.mxu0 %v112
    %134 = vmatpush.msra.mxu0 %v111
    %135 = vmatpush.msra.mxu0 %v110
    %136 = vmatpush.msra.mxu0 %v109
    %137 = vmatpush.msra.mxu0 %v108
    %138 = vmatpush.msra.mxu0 %v107
    %139 = vmatpush.msra.mxu0 %v106
    %140 = vmatpush.msra.mxu0 %v105
    %141 = vmatmul.f32.gmra.mxu0 %v104
    %v142 = vpop.f32.mrf.mxu0
    %v143 = vadd.f32 %v123, %v142
    %144 = vdwg.mxu0
    %145 = vst [vmem:[#allocation8] sm:$0xff] %v143
    // Predicated region
    $region34: #{tpu_custom_call.1} parent=1 // pred_check
      _
    $region35: #{tpu_custom_call.1} parent=1 // pred_check_branch
      %147 = sbr.rel (0) target = $region37
    $region36: #{tpu_custom_call.1} parent=1 // pred_region
      %149 = vsyncadd [#allocation4], 0
      %s151 = sshll.u32 [#allocation8], 4
      %s152 = int_to_ptr.vmem [resolvable:$true] %s151
      %s153 = sshll.u32 %s5, 4
      %s154 = int_to_ptr.hbm [resolvable:$true] %s153
      %156 = dma.vmem_to_hbm [thread:$0]  %s152, 128, %s154, [#allocation4]
    $region37: #{tpu_custom_call.1} parent=1 // pred_fallthru
      _
    // Predicated region
    $region38: #{tpu_custom_call.1} parent=1 // pred_check
      _
    $region39: #{tpu_custom_call.1} parent=1 // pred_check_branch
      %158 = sbr.rel (0) target = $region41
    $region40: #{tpu_custom_call.1} parent=1 // pred_region
      %160 = dma.done [#allocation4], 128
    $region41: #{tpu_custom_call.1} parent=1 // pred_fallthru
      _
    %161 = vsyncpa [#allocation3], 1
    %162 = vsyncpa [#allocation6], 1
    %163 = vsyncpa [#allocation4], 1

</llo_original>
